<compile_context>
chip_gen: v5e
topology: v5e:2x2
jax: 0.10.0
libtpu: 0.0.40
codegen_flags: <defaults>
</compile_context>

<pallas_src>
import functools

import jax
import jax.numpy as jnp
import numpy as np
from jax import lax
from jax.experimental import pallas as pl
from jax.experimental.pallas import tpu as pltpu


def _pad8(n: int) -> int:
    return -(-n // 8) * 8


def _round_up(n: int, m: int) -> int:
    return -(-n // m) * m


def _choose_tile_b(B: int, requested=None) -> int:
    if requested is not None:
        return max(128, _round_up(min(requested, max(B, 1)), 128))
    # Big tiles (few grid steps) to amortize per-step pipeline overhead,
    # but keep >= 2 grid steps when B is large enough (v7x megacore).
    tile = min(4096, _round_up(max(B, 1), 128))
    if B >= 256:
        tile = min(tile, _round_up(pl.cdiv(B, 2), 128))
    return max(128, tile)


def critic_kernel(x_ref, p_ref, o_ref, *, k_pad, n_hnodes,
                  off_w2, off_w3, off_tail):
    H = n_hnodes

    x = x_ref[...]
    # Matches x.float() in the PyTorch module; trace-time no-op when already f32.
    if x.dtype != jnp.float32:
        x = x.astype(jnp.float32)

    # Static, 8-aligned slices into the VMEM-resident packed parameter slab.
    w1 = p_ref[0:k_pad, :]                    # [K8, H]  (zero rows for feat pad)
    w2 = p_ref[off_w2:off_w2 + H, :]          # [H, H]
    w3 = p_ref[off_w3:off_w3 + H, :]          # [H, H]
    tail = p_ref[off_tail:off_tail + 8, :]    # [8, H] one aligned load
    w4r = tail[0:1, :]                        # [1, H]  fc4 weight as a row
    b1 = tail[1:2, :]                         # [1, H]
    b2 = tail[2:3, :]                         # [1, H]
    b3 = tail[3:4, :]                         # [1, H]
    b4 = tail[4:5, 0:1]                       # [1, 1]

    h = jnp.maximum(jnp.dot(x, w1, preferred_element_type=jnp.float32) + b1, 0.0)
    h = jnp.maximum(jnp.dot(h, w2, preferred_element_type=jnp.float32) + b2, 0.0)
    h = jnp.maximum(jnp.dot(h, w3, preferred_element_type=jnp.float32) + b3, 0.0)

    # fc4: lane-dense (1, tile_b) result on the MXU (contract over H).
    out = lax.dot_general(w4r, h, (((1,), (1,)), ((), ())),
                          preferred_element_type=jnp.float32) + b4
    o_ref[...] = out.astype(o_ref.dtype)


def critic_forward(obs, action, packed_params, *, n_obs, n_actions,
                   n_hnodes=64, tile_b=None):
    """Pallas forward of the PyTorch Critic."""
    assert obs.shape[-1] == n_obs and action.shape[-1] == n_actions
    B = obs.shape[0]
    K = n_obs + n_actions
    K8 = _pad8(K)
    H = n_hnodes

    # hstack once, outside the kernel; pad the feature dim to 8-aligned width
    # (the corresponding W1 slab rows are zero, so this is exact).
    x = jnp.concatenate([obs, action], axis=-1)
    if x.dtype != jnp.float32:
        x = x.astype(jnp.float32)
    if K8 != K:
        x = jnp.pad(x, ((0, 0), (0, K8 - K)))

    tb = _choose_tile_b(B, tile_b)
    num_tiles = pl.cdiv(B, tb)
    B_pad = num_tiles * tb
    if B_pad != B:
        x = jnp.pad(x, ((0, B_pad - B), (0, 0)))

    # Packed-slab static layout (rows, all with H lanes).
    off_w2 = K8
    off_w3 = K8 + H
    off_tail = K8 + 2 * H
    R = off_tail + 8
    assert packed_params.shape == (R, H), (packed_params.shape, (R, H))

    kernel = functools.partial(
        critic_kernel, k_pad=K8, n_hnodes=H,
        off_w2=off_w2, off_w3=off_w3, off_tail=off_tail)

    flops = 2 * B_pad * (K8 * H + 2 * H * H + H)
    # Lane-padded HBM traffic: input rows move as 128-lane tiles; output is
    # lane-dense but sublane-padded; params are lane-padded to 128.
    bytes_accessed = 4 * (B_pad * 128 + 8 * B_pad + R * 128)

    out = pl.pallas_call(
        kernel,
        out_shape=jax.ShapeDtypeStruct((1, B_pad), jnp.float32),
        grid=(num_tiles,),
        in_specs=[
            pl.BlockSpec((tb, K8), lambda i: (i, 0)),
            pl.BlockSpec((R, H), lambda i: (0, 0)),   # resident across steps
        ],
        out_specs=pl.BlockSpec((1, tb), lambda i: (0, i)),
        compiler_params=pltpu.CompilerParams(
            dimension_semantics=("parallel",),
            vmem_limit_bytes=32 * 1024 * 1024),
        cost_estimate=pl.CostEstimate(
            flops=flops, transcendentals=0, bytes_accessed=bytes_accessed),
    )(x, packed_params)

    return out[0, :B].reshape(B, 1)


def init_critic_params(key, n_obs, n_actions, n_hnodes=64):
    """PyTorch nn.Linear-style init: uniform(-1/sqrt(fan_in), 1/sqrt(fan_in)).
    Weights are [in, out] (transposed vs torch); biases are [out]."""
    dims = [(n_obs + n_actions, n_hnodes),
            (n_hnodes, n_hnodes),
            (n_hnodes, n_hnodes),
            (n_hnodes, 1)]
    params = []
    for fan_in, fan_out in dims:
        key, kw, kb = jax.random.split(key, 3)
        bound = 1.0 / np.sqrt(fan_in)
        w = jax.random.uniform(kw, (fan_in, fan_out), jnp.float32, -bound, bound)
        b = jax.random.uniform(kb, (fan_out,), jnp.float32, -bound, bound)
        params += [w, b]
    return tuple(params)


def pack_critic_params(params, n_obs, n_actions, n_hnodes=64):
    """One-time pack of all weights/biases into a single 8-aligned f32 slab."""
    w1, b1, w2, b2, w3, b3, w4, b4 = params
    K = n_obs + n_actions
    K8 = _pad8(K)
    H = n_hnodes
    segs = [
        jnp.pad(w1.astype(jnp.float32), ((0, K8 - K), (0, 0))),  # [K8, H]
        w2.astype(jnp.float32),                                  # [H, H]
        w3.astype(jnp.float32),                                  # [H, H]
    ]
    tail = jnp.zeros((8, H), jnp.float32)
    tail = tail.at[0].set(w4[:, 0].astype(jnp.float32))          # fc4 weight row
    tail = tail.at[1].set(b1.astype(jnp.float32))
    tail = tail.at[2].set(b2.astype(jnp.float32))
    tail = tail.at[3].set(b3.astype(jnp.float32))
    tail = tail.at[4].set(jnp.full((H,), jnp.asarray(b4).reshape(()).astype(jnp.float32)))
    segs.append(tail)
    return jnp.concatenate(segs, axis=0)


def critic_reference(obs, action, params):
    """Plain-JAX reference matching the PyTorch forward."""
    w1, b1, w2, b2, w3, b3, w4, b4 = params
    x = jnp.concatenate([obs, action], axis=-1).astype(jnp.float32)
    x = jnp.maximum(x @ w1 + b1, 0.0)
    x = jnp.maximum(x @ w2 + b2, 0.0)
    x = jnp.maximum(x @ w3 + b3, 0.0)
    return x @ w4 + b4


if __name__ == "__main__":
    key = jax.random.PRNGKey(0)
    n_obs, n_actions, n_hnodes = 8, 4, 64

    key, k_params = jax.random.split(key)
    params = init_critic_params(k_params, n_obs, n_actions, n_hnodes)
    packed = pack_critic_params(params, n_obs, n_actions, n_hnodes)

    # batch=300 -> 2 grid steps + padded tail rows; batch=4 -> single tiny tile.
    for batch in (300, 4):
        key, k_obs, k_act = jax.random.split(key, 3)
        obs = jax.random.normal(k_obs, (batch, n_obs), jnp.float32)
        action = jax.random.normal(k_act, (batch, n_actions), jnp.float32)

        out = critic_forward(obs, action, packed, n_obs=n_obs,
                             n_actions=n_actions, n_hnodes=n_hnodes)
        out = jax.block_until_ready(out)

        ref = critic_reference(obs, action, params)
        np.testing.assert_allclose(np.asarray(out), np.asarray(ref),
                                   rtol=2e-5, atol=2e-5)
        assert out.shape == (batch, 1)

    print("KERNEL_OK")
</pallas_src>

<mosaic_0001>
module attributes {stable_mosaic.version = 11 : i64} {
  func.func @critic_kernel(%arg0: i32, %arg1: memref<256x16xf32, #tpu.memory_space<vmem>>, %arg2: memref<152x64xf32, #tpu.memory_space<vmem>>, %arg3: memref<1x256xf32, #tpu.memory_space<vmem>>) attributes {dimension_semantics = [#tpu.dimension_semantics<parallel>], iteration_bounds = array<i64: 2>, scalar_prefetch = 0 : i64, scratch_operands = 0 : i64, tpu.core_type = #tpu.core_type<tc>, window_params = [{transform_indices = @transform_0, window_bounds = array<i64: 256, 16>}, {pipeline_mode = #tpu.pipeline_mode<synchronous>, transform_indices = @transform_1, window_bounds = array<i64: 152, 64>}, {transform_indices = @transform_2, window_bounds = array<i64: 1, 256>}]} {
    %c0 = arith.constant 0 : index
    %c0_0 = arith.constant 0 : index
    %0 = vector.load %arg1[%c0, %c0_0] : memref<256x16xf32, #tpu.memory_space<vmem>>, vector<256x16xf32>
    %c0_1 = arith.constant 0 : index
    %c0_2 = arith.constant 0 : index
    %1 = vector.load %arg2[%c0_1, %c0_2] : memref<152x64xf32, #tpu.memory_space<vmem>>, vector<16x64xf32>
    %c16 = arith.constant 16 : index
    %c0_3 = arith.constant 0 : index
    %2 = vector.load %arg2[%c16, %c0_3] : memref<152x64xf32, #tpu.memory_space<vmem>>, vector<64x64xf32>
    %c80 = arith.constant 80 : index
    %c0_4 = arith.constant 0 : index
    %3 = vector.load %arg2[%c80, %c0_4] : memref<152x64xf32, #tpu.memory_space<vmem>>, vector<64x64xf32>
    %c144 = arith.constant 144 : index
    %c0_5 = arith.constant 0 : index
    %4 = vector.load %arg2[%c144, %c0_5] : memref<152x64xf32, #tpu.memory_space<vmem>>, vector<8x64xf32>
    %5 = vector.extract_strided_slice %4 {offsets = [0, 0], sizes = [1, 64], strides = [1, 1]} : vector<8x64xf32> to vector<1x64xf32>
    %6 = vector.extract_strided_slice %4 {offsets = [1, 0], sizes = [1, 64], strides = [1, 1]} : vector<8x64xf32> to vector<1x64xf32>
    %7 = vector.extract_strided_slice %4 {offsets = [2, 0], sizes = [1, 64], strides = [1, 1]} : vector<8x64xf32> to vector<1x64xf32>
    %8 = vector.extract_strided_slice %4 {offsets = [3, 0], sizes = [1, 64], strides = [1, 1]} : vector<8x64xf32> to vector<1x64xf32>
    %9 = vector.extract_strided_slice %4 {offsets = [4, 0], sizes = [1, 1], strides = [1, 1]} : vector<8x64xf32> to vector<1x1xf32>
    %cst = arith.constant dense<0.000000e+00> : vector<256x64xf32>
    %10 = tpu.matmul %0, %1, %cst {dimension_numbers = #tpu.dot_dimension_numbers<[1], [0], [0], [1], [0, 0, 1, 1], [], []>} : vector<256x16xf32>, vector<16x64xf32>, vector<256x64xf32> -> vector<256x64xf32>
    %11 = vector.broadcast %6 : vector<1x64xf32> to vector<256x64xf32>
    %12 = arith.addf %10, %11 : vector<256x64xf32>
    %cst_6 = arith.constant 0.000000e+00 : f32
    %13 = vector.broadcast %cst_6 : f32 to vector<256x64xf32>
    %14 = arith.maximumf %12, %13 : vector<256x64xf32>
    %cst_7 = arith.constant dense<0.000000e+00> : vector<256x64xf32>
    %15 = tpu.matmul %14, %2, %cst_7 {dimension_numbers = #tpu.dot_dimension_numbers<[1], [0], [0], [1], [0, 0, 1, 1], [], []>} : vector<256x64xf32>, vector<64x64xf32>, vector<256x64xf32> -> vector<256x64xf32>
    %16 = vector.broadcast %7 : vector<1x64xf32> to vector<256x64xf32>
    %17 = arith.addf %15, %16 : vector<256x64xf32>
    %cst_8 = arith.constant 0.000000e+00 : f32
    %18 = vector.broadcast %cst_8 : f32 to vector<256x64xf32>
    %19 = arith.maximumf %17, %18 : vector<256x64xf32>
    %cst_9 = arith.constant dense<0.000000e+00> : vector<256x64xf32>
    %20 = tpu.matmul %19, %3, %cst_9 {dimension_numbers = #tpu.dot_dimension_numbers<[1], [0], [0], [1], [0, 0, 1, 1], [], []>} : vector<256x64xf32>, vector<64x64xf32>, vector<256x64xf32> -> vector<256x64xf32>
    %21 = vector.broadcast %8 : vector<1x64xf32> to vector<256x64xf32>
    %22 = arith.addf %20, %21 : vector<256x64xf32>
    %cst_10 = arith.constant 0.000000e+00 : f32
    %23 = vector.broadcast %cst_10 : f32 to vector<256x64xf32>
    %24 = arith.maximumf %22, %23 : vector<256x64xf32>
    %cst_11 = arith.constant dense<0.000000e+00> : vector<1x256xf32>
    %25 = tpu.matmul %5, %24, %cst_11 {dimension_numbers = #tpu.dot_dimension_numbers<[1], [1], [0], [0], [0, 0, 1, 0], [], []>} : vector<1x64xf32>, vector<256x64xf32>, vector<1x256xf32> -> vector<1x256xf32>
    %26 = vector.broadcast %9 : vector<1x1xf32> to vector<1x256xf32>
    %27 = arith.addf %25, %26 : vector<1x256xf32>
    %c0_12 = arith.constant 0 : index
    %c0_13 = arith.constant 0 : index
    %28 = vector.load %arg3[%c0_12, %c0_13] : memref<1x256xf32, #tpu.memory_space<vmem>>, vector<1x256xf32>
    tpu.vector_store %arg3[%c0_12, %c0_13], %27 {strides = array<i32>} : memref<1x256xf32, #tpu.memory_space<vmem>>, vector<1x256xf32>,
    return
  }
  func.func @transform_0(%arg0: i32) -> (i32, i32) {
    %c0_i32 = arith.constant 0 : i32
    %c0_i32_0 = arith.constant 0 : i32
    return %arg0, %c0_i32 : i32, i32
  }
  func.func @transform_1(%arg0: i32) -> (i32, i32) {
    %c0_i32 = arith.constant 0 : i32
    %c0_i32_0 = arith.constant 0 : i32
    %c0_i32_1 = arith.constant 0 : i32
    return %c0_i32, %c0_i32_0 : i32, i32
  }
  func.func @transform_2(%arg0: i32) -> (i32, i32) {
    %c0_i32 = arith.constant 0 : i32
    %c0_i32_0 = arith.constant 0 : i32
    return %c0_i32, %arg0 : i32, i32
  }
}

</mosaic_0001>

<llo_original>
// kernel: tpu_custom_call.1
$region0: #{tpu_custom_call.1}
  #allocation0 [shape = 'u32[]', space=smem, size = 0x4, offset = 0x4, fixed_abs, tag = 'smem constant byte address 0x4 - core index']
  #allocation1 [shape = 'u32[72,128]{1,0:T(1,128)}', space=vmem, size = 0x9000, scoped, tag = 'internal scratch']
  %s0 = inlined_call_operand.vmem [shape: f32[512,16], index: 0, kind: input, shape index: {}]
  %s1 = inlined_call_operand.vmem [shape: f32[152,64], index: 1, kind: input, shape index: {}]
  %s2 = inlined_call_operand.hbm [shape: f32[1,512], index: 2, kind: output, shape index: {}]
  %s3 = sld [smem:[#allocation0]]
  $region41: #{tpu_custom_call.1} parent=0
    _
  %s5 = ssub.s32 1, %s3
  %s6 = scalar_select 0, %s5, %s3
  $region1: #{tpu_custom_call.1} parent=0
    #allocation2 [shape = 'u8[2048]{0}', space=vmem, size = 0x800, scoped, tag = 'output window, operand 0']
    #allocation3 [shape = 's32[2]{0}', space=sflag, size = 0x8, scoped, tag = 'scoped memory for tpu_custom_call.1']
    %7 = vsyncpa [#allocation3], 0
    %s8 = scalar_lea.sflag [#allocation3], 1
    %9 = vsyncpa %s8, 0
    loop: start=0, step=1, limit=4
    $region2: #{tpu_custom_call.1} parent=1 // loop_pre_header
      _
    $region3: #{tpu_custom_call.1} parent=1 // loop_header
      %s11 = sphi 0, %s15
      %p12 = scmp.ge.s32.totalorder %s11, 4
      %s21 = sphi 0, %s23
      %s24 = sphi 0, %s21
      %s25 = sphi 0, %s24
      %s41 = sphi 0, %s25
      %s45 = sphi 0, %s45
      %s47 = sphi 0, %s45
      %s48 = sphi 0, %s47
      %s62 = sphi 0, %s48
      %s68 = sphi 0, %s70
      %s71 = sphi 0, %s68
      %s72 = sphi 0, %s71
      %s88 = sphi 0, %s72
    $region4: #{tpu_custom_call.1} parent=1 // loop_header_branch
      %14 = sbr.rel (%p12) target = $region8
    $region5: #{tpu_custom_call.1} parent=1 // loop_body
      %s16 = ssub.s32 %s11, 1
      %s17 = ssub.s32 %s11, 2
      %s18 = sadd.s32 %s11, 1
      %s19 = ssub.s32 %s11, %s18
      %p20 = scmp.eq.s32.totalorder %s19, 0
      %s22 = sadd.s32 %s21, 1
      %s23 = scalar_select %p20, %s21, %s22
      %p26 = pneg %p20
      %p27 = scmp.eq.s32.totalorder %s11, 1
      %p28 = por %p26, %p27
      %p29 = scmp.ne.s32.totalorder %s21, %s24
      %p30 = scmp.eq.s32.totalorder %s11, 0
      %p31 = por %p29, %p30
      %p32 = scmp.ne.s32.totalorder %s21, %s24
      %p33 = scmp.eq.s32.totalorder %s16, 1
      %p34 = por %p32, %p33
      %p35 = scmp.ne.s32.totalorder %s24, %s25
      %p36 = scmp.eq.s32.totalorder %s16, 0
      %p37 = por %p35, %p36
      %p38 = scmp.ne.s32.totalorder %s24, %s25
      %p39 = scmp.eq.s32.totalorder %s17, 1
      %p40 = por %p38, %p39
      %p42 = scmp.ne.s32.totalorder %s25, %s41
      %p43 = scmp.eq.s32.totalorder %s17, 0
      %p44 = por %p42, %p43
      %s46 = sadd.s32 %s45, 1
      %p49 = scmp.eq.s32.totalorder %s11, 1
      %p50 = scmp.ne.s32.totalorder %s45, %s47
      %p51 = scmp.eq.s32.totalorder %s11, 0
      %p52 = por %p50, %p51
      %p53 = scmp.ne.s32.totalorder %s45, %s47
      %p54 = scmp.eq.s32.totalorder %s16, 1
      %p55 = por %p53, %p54
      %p56 = scmp.ne.s32.totalorder %s47, %s48
      %p57 = scmp.eq.s32.totalorder %s16, 0
      %p58 = por %p56, %p57
      %p59 = scmp.ne.s32.totalorder %s47, %s48
      %p60 = scmp.eq.s32.totalorder %s17, 1
      %p61 = por %p59, %p60
      %p63 = scmp.ne.s32.totalorder %s48, %s62
      %p64 = scmp.eq.s32.totalorder %s17, 0
      %p65 = por %p63, %p64
      %s66 = ssub.s32 %s11, %s18
      %p67 = scmp.eq.s32.totalorder %s66, 0
      %s69 = sadd.s32 %s68, 1
      %s70 = scalar_select %p67, %s68, %s69
      %p73 = pneg %p67
      %p74 = scmp.eq.s32.totalorder %s11, 1
      %p75 = por %p73, %p74
      %p76 = scmp.ne.s32.totalorder %s68, %s71
      %p77 = scmp.eq.s32.totalorder %s11, 0
      %p78 = por %p76, %p77
      %p79 = scmp.ne.s32.totalorder %s68, %s71
      %p80 = scmp.eq.s32.totalorder %s16, 1
      %p81 = por %p79, %p80
      %p82 = scmp.ne.s32.totalorder %s71, %s72
      %p83 = scmp.eq.s32.totalorder %s16, 0
      %p84 = por %p82, %p83
      %p85 = scmp.ne.s32.totalorder %s71, %s72
      %p86 = scmp.eq.s32.totalorder %s17, 1
      %p87 = por %p85, %p86
      %p89 = scmp.ne.s32.totalorder %s72, %s88
      %p90 = scmp.eq.s32.totalorder %s17, 0
      %p91 = por %p89, %p90
      %p92 = scmp.le.s32.totalorder 1, %s11
      %p93 = scmp.lt.s32.totalorder %s11, 3
      %p94 = pnand %p92, %p93
      %p95 = pneg %p94
      // Predicated region
      $region9: #{tpu_custom_call.1} parent=5 // pred_check
        _
      $region10: #{tpu_custom_call.1} parent=5 // pred_check_branch
        %97 = sbr.rel (%p94) target = $region12
      $region11: #{tpu_custom_call.1} parent=5 // pred_region
        %s98 = ssub.s32 %s11, 1
        // Predicated region
        $region13: #{tpu_custom_call.1} parent=11 // pred_check
          %p99 = pneg %p58
        $region14: #{tpu_custom_call.1} parent=11 // pred_check_branch
          %101 = sbr.rel (%p99) target = $region16
        $region15: #{tpu_custom_call.1} parent=11 // pred_region
          _
        $region16: #{tpu_custom_call.1} parent=11 // pred_fallthru
          _
      $region12: #{tpu_custom_call.1} parent=5 // pred_fallthru
        _
      %p102 = scmp.lt.s32.totalorder %s11, 2
      // Predicated region
      $region17: #{tpu_custom_call.1} parent=5 // pred_check
        %p103 = pneg %p102
      $region18: #{tpu_custom_call.1} parent=5 // pred_check_branch
        %105 = sbr.rel (%p103) target = $region20
      $region19: #{tpu_custom_call.1} parent=5 // pred_region
        // Predicated region
        $region21: #{tpu_custom_call.1} parent=19 // pred_check
          %p106 = pneg %p31
        $region22: #{tpu_custom_call.1} parent=19 // pred_check_branch
          %108 = sbr.rel (%p106) target = $region24
        $region23: #{tpu_custom_call.1} parent=19 // pred_region
          %s109 = smul.u32 32, %s11
          %p110 = scmp.lt.s32.totalorder %s109, 63
          %s111 = scalar_select %p110, %s109, 63
          %s112 = smul.addr %s111, 8
          %s113 = scalar_lea.vmem %s0, %s112
          %s114 = smul.u32 32, %s11
        $region24: #{tpu_custom_call.1} parent=19 // pred_fallthru
          _
      $region20: #{tpu_custom_call.1} parent=5 // pred_fallthru
        _
      %p115 = scmp.le.s32.totalorder 1, %s11
      %p116 = scmp.lt.s32.totalorder %s11, 3
      %p117 = pnand %p115, %p116
      %p118 = pneg %p117
      // Predicated region
      $region25: #{tpu_custom_call.1} parent=5 // pred_check
        _
      $region26: #{tpu_custom_call.1} parent=5 // pred_check_branch
        %120 = sbr.rel (%p117) target = $region28
      $region27: #{tpu_custom_call.1} parent=5 // pred_region
        %s121 = ssub.s32 %s11, 1
        %s122 = smul.u32 32, %s16
        %p123 = scmp.lt.s32.totalorder %s122, 63
        %s124 = scalar_select %p123, %s122, 63
        %s125 = smul.addr %s124, 8
        %s126 = scalar_lea.vmem %s0, %s125
        %p127 = pneg %p37
        %p128 = pneg %p34
        %p129 = pneg %p58
        %p130 = pneg %p55
        %p131 = pneg %p84
        %p132 = pneg %p81
        %s133 = sand.u32 %s71, 1
        %s134 = scalar_lea.sflag [#allocation3], %s133
        %s135 = sand.u32 %s71, 1
        %s136 = smul.addr %s135, 2
        %s137 = scalar_lea.vmem [#allocation2], %s136
        %s138 = smul.u32 32, %s16
        %p139 = scmp.lt.s32.totalorder %s138, 63
        %s140 = scalar_select %p139, %s138, 63
        %s141 = smul.addr %s140, 8
        %s142 = scalar_lea.vmem %s0, %s141
        %s143 = smul.u32 32, %s16
        %s144 = smul.u32 2, %s16
        %v145 = vld [vmem:[%s142] sm:$0xff]
        %v146 = vld [vmem:[%s142 + $0x8] sm:$0xff]
        %v147 = vld [vmem:[%s142 + $0x10] sm:$0xff]
        %v148 = vld [vmem:[%s142 + $0x18] sm:$0xff]
        %v149 = vld [vmem:[%s142 + $0x20] sm:$0xff]
        %v150 = vld [vmem:[%s142 + $0x28] sm:$0xff]
        %v151 = vld [vmem:[%s142 + $0x30] sm:$0xff]
        %v152 = vld [vmem:[%s142 + $0x38] sm:$0xff]
        %v153 = vld [vmem:[%s142 + $0x40] sm:$0xff]
        %v154 = vld [vmem:[%s142 + $0x48] sm:$0xff]
        %v155 = vld [vmem:[%s142 + $0x50] sm:$0xff]
        %v156 = vld [vmem:[%s142 + $0x58] sm:$0xff]
        %v157 = vld [vmem:[%s142 + $0x60] sm:$0xff]
        %v158 = vld [vmem:[%s142 + $0x68] sm:$0xff]
        %v159 = vld [vmem:[%s142 + $0x70] sm:$0xff]
        %v160 = vld [vmem:[%s142 + $0x78] sm:$0xff]
        %v161 = vld [vmem:[%s142 + $0x80] sm:$0xff]
        %v162 = vld [vmem:[%s142 + $0x88] sm:$0xff]
        %v163 = vld [vmem:[%s142 + $0x90] sm:$0xff]
        %v164 = vld [vmem:[%s142 + $0x98] sm:$0xff]
        %v165 = vld [vmem:[%s142 + $0xa0] sm:$0xff]
        %v166 = vld [vmem:[%s142 + $0xa8] sm:$0xff]
        %v167 = vld [vmem:[%s142 + $0xb0] sm:$0xff]
        %v168 = vld [vmem:[%s142 + $0xb8] sm:$0xff]
        %v169 = vld [vmem:[%s142 + $0xc0] sm:$0xff]
        %v170 = vld [vmem:[%s142 + $0xc8] sm:$0xff]
        %v171 = vld [vmem:[%s142 + $0xd0] sm:$0xff]
        %v172 = vld [vmem:[%s142 + $0xd8] sm:$0xff]
        %v173 = vld [vmem:[%s142 + $0xe0] sm:$0xff]
        %v174 = vld [vmem:[%s142 + $0xe8] sm:$0xff]
        %v175 = vld [vmem:[%s142 + $0xf0] sm:$0xff]
        %v176 = vld [vmem:[%s142 + $0xf8] sm:$0xff]
        %v177 = vld [vmem:[%s1] sm:$0xff]
        %v178 = vld [vmem:[%s1 + $0x8] sm:$0xff]
        %v179 = vld [vmem:[%s1 + $0x10] sm:$0xff]
        %v180 = vld [vmem:[%s1 + $0x18] sm:$0xff]
        %v181 = vld [vmem:[%s1 + $0x20] sm:$0xff]
        %v182 = vld [vmem:[%s1 + $0x28] sm:$0xff]
        %v183 = vld [vmem:[%s1 + $0x30] sm:$0xff]
        %v184 = vld [vmem:[%s1 + $0x38] sm:$0xff]
        %v185 = vld [vmem:[%s1 + $0x40] sm:$0xff]
        %v186 = vld [vmem:[%s1 + $0x48] sm:$0xff]
        %v187 = vld [vmem:[%s1 + $0x50] sm:$0xff]
        %v188 = vld [vmem:[%s1 + $0x58] sm:$0xff]
        %v189 = vld [vmem:[%s1 + $0x60] sm:$0xff]
        %v190 = vld [vmem:[%s1 + $0x68] sm:$0xff]
        %v191 = vld [vmem:[%s1 + $0x70] sm:$0xff]
        %v192 = vld [vmem:[%s1 + $0x78] sm:$0xff]
        %v193 = vld [vmem:[%s1 + $0x80] sm:$0xff]
        %v194 = vld [vmem:[%s1 + $0x88] sm:$0xff]
        %v195 = vld [vmem:[%s1 + $0x90] sm:$0xff]
        %v196 = vperm.slane %v195, 1
        %vm197 = vcmask 130048
        %v199 = vsel %vm197, %v145, 0
        %v202 = vsel %vm197, %v146, 0
        %v205 = vsel %vm197, %v147, 0
        %v208 = vsel %vm197, %v148, 0
        %v211 = vsel %vm197, %v149, 0
        %v214 = vsel %vm197, %v150, 0
        %v217 = vsel %vm197, %v151, 0
        %v220 = vsel %vm197, %v152, 0
        %v223 = vsel %vm197, %v153, 0
        %v226 = vsel %vm197, %v154, 0
        %v229 = vsel %vm197, %v155, 0
        %v232 = vsel %vm197, %v156, 0
        %v235 = vsel %vm197, %v157, 0
        %v238 = vsel %vm197, %v158, 0
        %v241 = vsel %vm197, %v159, 0
        %v244 = vsel %vm197, %v160, 0
        %v247 = vsel %vm197, %v161, 0
        %v250 = vsel %vm197, %v162, 0
        %v253 = vsel %vm197, %v163, 0
        %v256 = vsel %vm197, %v164, 0
        %v259 = vsel %vm197, %v165, 0
        %v262 = vsel %vm197, %v166, 0
        %v265 = vsel %vm197, %v167, 0
        %v268 = vsel %vm197, %v168, 0
        %v271 = vsel %vm197, %v169, 0
        %v274 = vsel %vm197, %v170, 0
        %v277 = vsel %vm197, %v171, 0
        %v280 = vsel %vm197, %v172, 0
        %v283 = vsel %vm197, %v173, 0
        %v286 = vsel %vm197, %v174, 0
        %v289 = vsel %vm197, %v175, 0
        %v292 = vsel %vm197, %v176, 0
        %294 = vmatpush.msra.mxu0 0.0
        %295 = vmatpush.msra.mxu0 0.0
        %296 = vmatpush.msra.mxu0 0.0
        %297 = vmatpush.msra.mxu0 0.0
        %298 = vmatpush.msra.mxu0 0.0
        %299 = vmatpush.msra.mxu0 0.0
        %300 = vmatpush.msra.mxu0 0.0
        %301 = vmatpush.msra.mxu0 0.0
        %302 = vmatpush.msra.mxu0 0.0
        %303 = vmatpush.msra.mxu0 0.0
        %304 = vmatpush.msra.mxu0 0.0
        %305 = vmatpush.msra.mxu0 0.0
        %306 = vmatpush.msra.mxu0 0.0
        %307 = vmatpush.msra.mxu0 0.0
        %308 = vmatpush.msra.mxu0 %v178
        %309 = vmatpush.msra.mxu0 %v177
        %310 = vmatmul.f32.gmra.mxu0 %v199
        %v311 = vpop.f32.mrf.mxu0
        %v312 = vadd.f32 %v196, %v311
        %313 = vmatmul.f32.gmra.mxu0 %v202
        %v314 = vpop.f32.mrf.mxu0
        %v315 = vadd.f32 %v196, %v314
        %316 = vmatmul.f32.gmra.mxu0 %v205
        %v317 = vpop.f32.mrf.mxu0
        %v318 = vadd.f32 %v196, %v317
        %319 = vmatmul.f32.gmra.mxu0 %v208
        %v320 = vpop.f32.mrf.mxu0
        %v321 = vadd.f32 %v196, %v320
        %322 = vmatmul.f32.gmra.mxu0 %v211
        %v323 = vpop.f32.mrf.mxu0
        %v324 = vadd.f32 %v196, %v323
        %325 = vmatmul.f32.gmra.mxu0 %v214
        %v326 = vpop.f32.mrf.mxu0
        %v327 = vadd.f32 %v196, %v326
        %328 = vmatmul.f32.gmra.mxu0 %v217
        %v329 = vpop.f32.mrf.mxu0
        %v330 = vadd.f32 %v196, %v329
        %331 = vmatmul.f32.gmra.mxu0 %v220
        %v332 = vpop.f32.mrf.mxu0
        %v333 = vadd.f32 %v196, %v332
        %334 = vmatmul.f32.gmra.mxu0 %v223
        %v335 = vpop.f32.mrf.mxu0
        %v336 = vadd.f32 %v196, %v335
        %337 = vmatmul.f32.gmra.mxu0 %v226
        %v338 = vpop.f32.mrf.mxu0
        %v339 = vadd.f32 %v196, %v338
        %340 = vmatmul.f32.gmra.mxu0 %v229
        %v341 = vpop.f32.mrf.mxu0
        %v342 = vadd.f32 %v196, %v341
        %343 = vmatmul.f32.gmra.mxu0 %v232
        %v344 = vpop.f32.mrf.mxu0
        %v345 = vadd.f32 %v196, %v344
        %346 = vmatmul.f32.gmra.mxu0 %v235
        %v347 = vpop.f32.mrf.mxu0
        %v348 = vadd.f32 %v196, %v347
        %349 = vmatmul.f32.gmra.mxu0 %v238
        %v350 = vpop.f32.mrf.mxu0
        %v351 = vadd.f32 %v196, %v350
        %352 = vmatmul.f32.gmra.mxu0 %v241
        %v353 = vpop.f32.mrf.mxu0
        %v354 = vadd.f32 %v196, %v353
        %355 = vmatmul.f32.gmra.mxu0 %v244
        %v356 = vpop.f32.mrf.mxu0
        %v357 = vadd.f32 %v196, %v356
        %358 = vmatmul.f32.gmra.mxu0 %v247
        %v359 = vpop.f32.mrf.mxu0
        %v360 = vadd.f32 %v196, %v359
        %361 = vmatmul.f32.gmra.mxu0 %v250
        %v362 = vpop.f32.mrf.mxu0
        %v363 = vadd.f32 %v196, %v362
        %364 = vmatmul.f32.gmra.mxu0 %v253
        %v365 = vpop.f32.mrf.mxu0
        %v366 = vadd.f32 %v196, %v365
        %367 = vmatmul.f32.gmra.mxu0 %v256
        %v368 = vpop.f32.mrf.mxu0
        %v369 = vadd.f32 %v196, %v368
        %370 = vmatmul.f32.gmra.mxu0 %v259
        %v371 = vpop.f32.mrf.mxu0
        %v372 = vadd.f32 %v196, %v371
        %373 = vmatmul.f32.gmra.mxu0 %v262
        %v374 = vpop.f32.mrf.mxu0
        %v375 = vadd.f32 %v196, %v374
        %376 = vmatmul.f32.gmra.mxu0 %v265
        %v377 = vpop.f32.mrf.mxu0
        %v378 = vadd.f32 %v196, %v377
        %379 = vmatmul.f32.gmra.mxu0 %v268
        %v380 = vpop.f32.mrf.mxu0
        %v381 = vadd.f32 %v196, %v380
        %382 = vmatmul.f32.gmra.mxu0 %v271
        %v383 = vpop.f32.mrf.mxu0
        %v384 = vadd.f32 %v196, %v383
        %385 = vmatmul.f32.gmra.mxu0 %v274
        %v386 = vpop.f32.mrf.mxu0
        %v387 = vadd.f32 %v196, %v386
        %388 = vmatmul.f32.gmra.mxu0 %v277
        %v389 = vpop.f32.mrf.mxu0
        %v390 = vadd.f32 %v196, %v389
        %391 = vmatmul.f32.gmra.mxu0 %v280
        %v392 = vpop.f32.mrf.mxu0
        %v393 = vadd.f32 %v196, %v392
        %394 = vmatmul.f32.gmra.mxu0 %v283
        %v395 = vpop.f32.mrf.mxu0
        %v396 = vadd.f32 %v196, %v395
        %397 = vmatmul.f32.gmra.mxu0 %v286
        %v398 = vpop.f32.mrf.mxu0
        %v399 = vadd.f32 %v196, %v398
        %400 = vmatmul.f32.gmra.mxu0 %v289
        %v401 = vpop.f32.mrf.mxu0
        %v402 = vadd.f32 %v196, %v401
        %403 = vmatmul.f32.gmra.mxu0 %v292
        %v404 = vpop.f32.mrf.mxu0
        %v405 = vadd.f32 %v196, %v404
        %406 = vdwg.mxu0
        %v407 = vmax.f32 %v312, 0.0
        %v408 = vmax.f32 %v315, 0.0
        %v409 = vmax.f32 %v318, 0.0
        %v410 = vmax.f32 %v321, 0.0
        %v411 = vmax.f32 %v324, 0.0
        %v412 = vmax.f32 %v327, 0.0
        %v413 = vmax.f32 %v330, 0.0
        %v414 = vmax.f32 %v333, 0.0
        %v415 = vmax.f32 %v336, 0.0
        %v416 = vmax.f32 %v339, 0.0
        %v417 = vmax.f32 %v342, 0.0
        %v418 = vmax.f32 %v345, 0.0
        %v419 = vmax.f32 %v348, 0.0
        %v420 = vmax.f32 %v351, 0.0
        %v421 = vmax.f32 %v354, 0.0
        %v422 = vmax.f32 %v357, 0.0
        %v423 = vmax.f32 %v360, 0.0
        %v424 = vmax.f32 %v363, 0.0
        %v425 = vmax.f32 %v366, 0.0
        %v426 = vmax.f32 %v369, 0.0
        %v427 = vmax.f32 %v372, 0.0
        %v428 = vmax.f32 %v375, 0.0
        %v429 = vmax.f32 %v378, 0.0
        %v430 = vmax.f32 %v381, 0.0
        %v431 = vmax.f32 %v384, 0.0
        %v432 = vmax.f32 %v387, 0.0
        %v433 = vmax.f32 %v390, 0.0
        %v434 = vmax.f32 %v393, 0.0
        %v435 = vmax.f32 %v396, 0.0
        %v436 = vmax.f32 %v399, 0.0
        %v437 = vmax.f32 %v402, 0.0
        %v438 = vmax.f32 %v405, 0.0
        %v439 = vperm.slane %v195, 2
        %vm440 = vcmask 523264
        %v442 = vsel %vm440, %v407, 0
        %v445 = vsel %vm440, %v408, 0
        %v448 = vsel %vm440, %v409, 0
        %v451 = vsel %vm440, %v410, 0
        %v454 = vsel %vm440, %v411, 0
        %v457 = vsel %vm440, %v412, 0
        %v460 = vsel %vm440, %v413, 0
        %v463 = vsel %vm440, %v414, 0
        %v466 = vsel %vm440, %v415, 0
        %v469 = vsel %vm440, %v416, 0
        %v472 = vsel %vm440, %v417, 0
        %v475 = vsel %vm440, %v418, 0
        %v478 = vsel %vm440, %v419, 0
        %v481 = vsel %vm440, %v420, 0
        %v484 = vsel %vm440, %v421, 0
        %v487 = vsel %vm440, %v422, 0
        %v490 = vsel %vm440, %v423, 0
        %v493 = vsel %vm440, %v424, 0
        %v496 = vsel %vm440, %v425, 0
        %v499 = vsel %vm440, %v426, 0
        %v502 = vsel %vm440, %v427, 0
        %v505 = vsel %vm440, %v428, 0
        %v508 = vsel %vm440, %v429, 0
        %v511 = vsel %vm440, %v430, 0
        %v514 = vsel %vm440, %v431, 0
        %v517 = vsel %vm440, %v432, 0
        %v520 = vsel %vm440, %v433, 0
        %v523 = vsel %vm440, %v434, 0
        %v526 = vsel %vm440, %v435, 0
        %v529 = vsel %vm440, %v436, 0
        %v532 = vsel %vm440, %v437, 0
        %v535 = vsel %vm440, %v438, 0
        %537 = vmatpush.msra.mxu0 0.0
        %538 = vmatpush.msra.mxu0 0.0
        %539 = vmatpush.msra.mxu0 0.0
        %540 = vmatpush.msra.mxu0 0.0
        %541 = vmatpush.msra.mxu0 0.0
        %542 = vmatpush.msra.mxu0 0.0
        %543 = vmatpush.msra.mxu0 0.0
        %544 = vmatpush.msra.mxu0 0.0
        %545 = vmatpush.msra.mxu0 %v186
        %546 = vmatpush.msra.mxu0 %v185
        %547 = vmatpush.msra.mxu0 %v184
        %548 = vmatpush.msra.mxu0 %v183
        %549 = vmatpush.msra.mxu0 %v182
        %550 = vmatpush.msra.mxu0 %v181
        %551 = vmatpush.msra.mxu0 %v180
        %552 = vmatpush.msra.mxu0 %v179
        %553 = vmatmul.f32.gmra.mxu0 %v442
        %v554 = vpop.f32.mrf.mxu0
        %v555 = vadd.f32 %v439, %v554
        %556 = vmatmul.f32.gmra.mxu0 %v445
        %v557 = vpop.f32.mrf.mxu0
        %v558 = vadd.f32 %v439, %v557
        %559 = vmatmul.f32.gmra.mxu0 %v448
        %v560 = vpop.f32.mrf.mxu0
        %v561 = vadd.f32 %v439, %v560
        %562 = vmatmul.f32.gmra.mxu0 %v451
        %v563 = vpop.f32.mrf.mxu0
        %v564 = vadd.f32 %v439, %v563
        %565 = vmatmul.f32.gmra.mxu0 %v454
        %v566 = vpop.f32.mrf.mxu0
        %v567 = vadd.f32 %v439, %v566
        %568 = vmatmul.f32.gmra.mxu0 %v457
        %v569 = vpop.f32.mrf.mxu0
        %v570 = vadd.f32 %v439, %v569
        %571 = vmatmul.f32.gmra.mxu0 %v460
        %v572 = vpop.f32.mrf.mxu0
        %v573 = vadd.f32 %v439, %v572
        %574 = vmatmul.f32.gmra.mxu0 %v463
        %v575 = vpop.f32.mrf.mxu0
        %v576 = vadd.f32 %v439, %v575
        %577 = vmatmul.f32.gmra.mxu0 %v466
        %v578 = vpop.f32.mrf.mxu0
        %v579 = vadd.f32 %v439, %v578
        %580 = vmatmul.f32.gmra.mxu0 %v469
        %v581 = vpop.f32.mrf.mxu0
        %v582 = vadd.f32 %v439, %v581
        %583 = vmatmul.f32.gmra.mxu0 %v472
        %v584 = vpop.f32.mrf.mxu0
        %v585 = vadd.f32 %v439, %v584
        %586 = vmatmul.f32.gmra.mxu0 %v475
        %v587 = vpop.f32.mrf.mxu0
        %v588 = vadd.f32 %v439, %v587
        %589 = vmatmul.f32.gmra.mxu0 %v478
        %v590 = vpop.f32.mrf.mxu0
        %v591 = vadd.f32 %v439, %v590
        %592 = vmatmul.f32.gmra.mxu0 %v481
        %v593 = vpop.f32.mrf.mxu0
        %v594 = vadd.f32 %v439, %v593
        %595 = vmatmul.f32.gmra.mxu0 %v484
        %v596 = vpop.f32.mrf.mxu0
        %v597 = vadd.f32 %v439, %v596
        %598 = vmatmul.f32.gmra.mxu0 %v487
        %v599 = vpop.f32.mrf.mxu0
        %v600 = vadd.f32 %v439, %v599
        %601 = vmatmul.f32.gmra.mxu0 %v490
        %v602 = vpop.f32.mrf.mxu0
        %v603 = vadd.f32 %v439, %v602
        %604 = vmatmul.f32.gmra.mxu0 %v493
        %v605 = vpop.f32.mrf.mxu0
        %v606 = vadd.f32 %v439, %v605
        %607 = vmatmul.f32.gmra.mxu0 %v496
        %v608 = vpop.f32.mrf.mxu0
        %v609 = vadd.f32 %v439, %v608
        %610 = vmatmul.f32.gmra.mxu0 %v499
        %v611 = vpop.f32.mrf.mxu0
        %v612 = vadd.f32 %v439, %v611
        %613 = vmatmul.f32.gmra.mxu0 %v502
        %v614 = vpop.f32.mrf.mxu0
        %v615 = vadd.f32 %v439, %v614
        %616 = vmatmul.f32.gmra.mxu0 %v505
        %v617 = vpop.f32.mrf.mxu0
        %v618 = vadd.f32 %v439, %v617
        %619 = vmatmul.f32.gmra.mxu0 %v508
        %v620 = vpop.f32.mrf.mxu0
        %v621 = vadd.f32 %v439, %v620
        %622 = vmatmul.f32.gmra.mxu0 %v511
        %v623 = vpop.f32.mrf.mxu0
        %v624 = vadd.f32 %v439, %v623
        %625 = vmatmul.f32.gmra.mxu0 %v514
        %v626 = vpop.f32.mrf.mxu0
        %v627 = vadd.f32 %v439, %v626
        %628 = vmatmul.f32.gmra.mxu0 %v517
        %v629 = vpop.f32.mrf.mxu0
        %v630 = vadd.f32 %v439, %v629
        %631 = vmatmul.f32.gmra.mxu0 %v520
        %v632 = vpop.f32.mrf.mxu0
        %v633 = vadd.f32 %v439, %v632
        %634 = vmatmul.f32.gmra.mxu0 %v523
        %v635 = vpop.f32.mrf.mxu0
        %v636 = vadd.f32 %v439, %v635
        %637 = vmatmul.f32.gmra.mxu0 %v526
        %v638 = vpop.f32.mrf.mxu0
        %v639 = vadd.f32 %v439, %v638
        %640 = vmatmul.f32.gmra.mxu0 %v529
        %v641 = vpop.f32.mrf.mxu0
        %v642 = vadd.f32 %v439, %v641
        %643 = vmatmul.f32.gmra.mxu0 %v532
        %v644 = vpop.f32.mrf.mxu0
        %v645 = vadd.f32 %v439, %v644
        %646 = vmatmul.f32.gmra.mxu0 %v535
        %v647 = vpop.f32.mrf.mxu0
        %v648 = vadd.f32 %v439, %v647
        %649 = vdwg.mxu0
        %v650 = vmax.f32 %v555, 0.0
        %v651 = vmax.f32 %v558, 0.0
        %v652 = vmax.f32 %v561, 0.0
        %v653 = vmax.f32 %v564, 0.0
        %v654 = vmax.f32 %v567, 0.0
        %v655 = vmax.f32 %v570, 0.0
        %v656 = vmax.f32 %v573, 0.0
        %v657 = vmax.f32 %v576, 0.0
        %v658 = vmax.f32 %v579, 0.0
        %v659 = vmax.f32 %v582, 0.0
        %v660 = vmax.f32 %v585, 0.0
        %v661 = vmax.f32 %v588, 0.0
        %v662 = vmax.f32 %v591, 0.0
        %v663 = vmax.f32 %v594, 0.0
        %v664 = vmax.f32 %v597, 0.0
        %v665 = vmax.f32 %v600, 0.0
        %v666 = vmax.f32 %v603, 0.0
        %v667 = vmax.f32 %v606, 0.0
        %v668 = vmax.f32 %v609, 0.0
        %v669 = vmax.f32 %v612, 0.0
        %v670 = vmax.f32 %v615, 0.0
        %v671 = vmax.f32 %v618, 0.0
        %v672 = vmax.f32 %v621, 0.0
        %v673 = vmax.f32 %v624, 0.0
        %v674 = vmax.f32 %v627, 0.0
        %v675 = vmax.f32 %v630, 0.0
        %v676 = vmax.f32 %v633, 0.0
        %v677 = vmax.f32 %v636, 0.0
        %v678 = vmax.f32 %v639, 0.0
        %v679 = vmax.f32 %v642, 0.0
        %v680 = vmax.f32 %v645, 0.0
        %v681 = vmax.f32 %v648, 0.0
        %v682 = vperm.slane %v195, 3
        %v684 = vsel %vm440, %v650, 0
        %v687 = vsel %vm440, %v651, 0
        %v690 = vsel %vm440, %v652, 0
        %v693 = vsel %vm440, %v653, 0
        %v696 = vsel %vm440, %v654, 0
        %v699 = vsel %vm440, %v655, 0
        %v702 = vsel %vm440, %v656, 0
        %v705 = vsel %vm440, %v657, 0
        %v708 = vsel %vm440, %v658, 0
        %v711 = vsel %vm440, %v659, 0
        %v714 = vsel %vm440, %v660, 0
        %v717 = vsel %vm440, %v661, 0
        %v720 = vsel %vm440, %v662, 0
        %v723 = vsel %vm440, %v663, 0
        %v726 = vsel %vm440, %v664, 0
        %v729 = vsel %vm440, %v665, 0
        %v732 = vsel %vm440, %v666, 0
        %v735 = vsel %vm440, %v667, 0
        %v738 = vsel %vm440, %v668, 0
        %v741 = vsel %vm440, %v669, 0
        %v744 = vsel %vm440, %v670, 0
        %v747 = vsel %vm440, %v671, 0
        %v750 = vsel %vm440, %v672, 0
        %v753 = vsel %vm440, %v673, 0
        %v756 = vsel %vm440, %v674, 0
        %v759 = vsel %vm440, %v675, 0
        %v762 = vsel %vm440, %v676, 0
        %v765 = vsel %vm440, %v677, 0
        %v768 = vsel %vm440, %v678, 0
        %v771 = vsel %vm440, %v679, 0
        %v774 = vsel %vm440, %v680, 0
        %v777 = vsel %vm440, %v681, 0
        %779 = vmatpush.msra.mxu0 0.0
        %780 = vmatpush.msra.mxu0 0.0
        %781 = vmatpush.msra.mxu0 0.0
        %782 = vmatpush.msra.mxu0 0.0
        %783 = vmatpush.msra.mxu0 0.0
        %784 = vmatpush.msra.mxu0 0.0
        %785 = vmatpush.msra.mxu0 0.0
        %786 = vmatpush.msra.mxu0 0.0
        %787 = vmatpush.msra.mxu0 %v194
        %788 = vmatpush.msra.mxu0 %v193
        %789 = vmatpush.msra.mxu0 %v192
        %790 = vmatpush.msra.mxu0 %v191
        %791 = vmatpush.msra.mxu0 %v190
        %792 = vmatpush.msra.mxu0 %v189
        %793 = vmatpush.msra.mxu0 %v188
        %794 = vmatpush.msra.mxu0 %v187
        %795 = vmatmul.f32.gmra.mxu0 %v684
        %v796 = vpop.f32.mrf.mxu0
        %v797 = vadd.f32 %v682, %v796
        %798 = vmatmul.f32.gmra.mxu0 %v687
        %v799 = vpop.f32.mrf.mxu0
        %v800 = vadd.f32 %v682, %v799
        %801 = vmatmul.f32.gmra.mxu0 %v690
        %v802 = vpop.f32.mrf.mxu0
        %v803 = vadd.f32 %v682, %v802
        %804 = vmatmul.f32.gmra.mxu0 %v693
        %v805 = vpop.f32.mrf.mxu0
        %v806 = vadd.f32 %v682, %v805
        %807 = vmatmul.f32.gmra.mxu0 %v696
        %v808 = vpop.f32.mrf.mxu0
        %v809 = vadd.f32 %v682, %v808
        %810 = vmatmul.f32.gmra.mxu0 %v699
        %v811 = vpop.f32.mrf.mxu0
        %v812 = vadd.f32 %v682, %v811
        %813 = vmatmul.f32.gmra.mxu0 %v702
        %v814 = vpop.f32.mrf.mxu0
        %v815 = vadd.f32 %v682, %v814
        %816 = vmatmul.f32.gmra.mxu0 %v705
        %v817 = vpop.f32.mrf.mxu0
        %v818 = vadd.f32 %v682, %v817
        %819 = vmatmul.f32.gmra.mxu0 %v708
        %v820 = vpop.f32.mrf.mxu0
        %v821 = vadd.f32 %v682, %v820
        %822 = vmatmul.f32.gmra.mxu0 %v711
        %v823 = vpop.f32.mrf.mxu0
        %v824 = vadd.f32 %v682, %v823
        %825 = vmatmul.f32.gmra.mxu0 %v714
        %v826 = vpop.f32.mrf.mxu0
        %v827 = vadd.f32 %v682, %v826
        %828 = vmatmul.f32.gmra.mxu0 %v717
        %v829 = vpop.f32.mrf.mxu0
        %v830 = vadd.f32 %v682, %v829
        %831 = vmatmul.f32.gmra.mxu0 %v720
        %v832 = vpop.f32.mrf.mxu0
        %v833 = vadd.f32 %v682, %v832
        %834 = vmatmul.f32.gmra.mxu0 %v723
        %v835 = vpop.f32.mrf.mxu0
        %v836 = vadd.f32 %v682, %v835
        %837 = vmatmul.f32.gmra.mxu0 %v726
        %v838 = vpop.f32.mrf.mxu0
        %v839 = vadd.f32 %v682, %v838
        %840 = vmatmul.f32.gmra.mxu0 %v729
        %v841 = vpop.f32.mrf.mxu0
        %v842 = vadd.f32 %v682, %v841
        %843 = vmatmul.f32.gmra.mxu0 %v732
        %v844 = vpop.f32.mrf.mxu0
        %v845 = vadd.f32 %v682, %v844
        %846 = vmatmul.f32.gmra.mxu0 %v735
        %v847 = vpop.f32.mrf.mxu0
        %v848 = vadd.f32 %v682, %v847
        %849 = vmatmul.f32.gmra.mxu0 %v738
        %v850 = vpop.f32.mrf.mxu0
        %v851 = vadd.f32 %v682, %v850
        %852 = vmatmul.f32.gmra.mxu0 %v741
        %v853 = vpop.f32.mrf.mxu0
        %v854 = vadd.f32 %v682, %v853
        %855 = vmatmul.f32.gmra.mxu0 %v744
        %v856 = vpop.f32.mrf.mxu0
        %v857 = vadd.f32 %v682, %v856
        %858 = vmatmul.f32.gmra.mxu0 %v747
        %v859 = vpop.f32.mrf.mxu0
        %v860 = vadd.f32 %v682, %v859
        %861 = vmatmul.f32.gmra.mxu0 %v750
        %v862 = vpop.f32.mrf.mxu0
        %v863 = vadd.f32 %v682, %v862
        %864 = vmatmul.f32.gmra.mxu0 %v753
        %v865 = vpop.f32.mrf.mxu0
        %v866 = vadd.f32 %v682, %v865
        %867 = vmatmul.f32.gmra.mxu0 %v756
        %v868 = vpop.f32.mrf.mxu0
        %v869 = vadd.f32 %v682, %v868
        %870 = vmatmul.f32.gmra.mxu0 %v759
        %v871 = vpop.f32.mrf.mxu0
        %v872 = vadd.f32 %v682, %v871
        %873 = vmatmul.f32.gmra.mxu0 %v762
        %v874 = vpop.f32.mrf.mxu0
        %v875 = vadd.f32 %v682, %v874
        %876 = vmatmul.f32.gmra.mxu0 %v765
        %v877 = vpop.f32.mrf.mxu0
        %v878 = vadd.f32 %v682, %v877
        %879 = vmatmul.f32.gmra.mxu0 %v768
        %v880 = vpop.f32.mrf.mxu0
        %v881 = vadd.f32 %v682, %v880
        %882 = vmatmul.f32.gmra.mxu0 %v771
        %v883 = vpop.f32.mrf.mxu0
        %v884 = vadd.f32 %v682, %v883
        %885 = vmatmul.f32.gmra.mxu0 %v774
        %v886 = vpop.f32.mrf.mxu0
        %v887 = vadd.f32 %v682, %v886
        %888 = vmatmul.f32.gmra.mxu0 %v777
        %v889 = vpop.f32.mrf.mxu0
        %v890 = vadd.f32 %v682, %v889
        %891 = vdwg.mxu0
        %v892 = vmax.f32 %v797, 0.0
        %v893 = vmax.f32 %v800, 0.0
        %v894 = vmax.f32 %v803, 0.0
        %v895 = vmax.f32 %v806, 0.0
        %v896 = vmax.f32 %v809, 0.0
        %v897 = vmax.f32 %v812, 0.0
        %v898 = vmax.f32 %v815, 0.0
        %v899 = vmax.f32 %v818, 0.0
        %v900 = vmax.f32 %v821, 0.0
        %v901 = vmax.f32 %v824, 0.0
        %v902 = vmax.f32 %v827, 0.0
        %v903 = vmax.f32 %v830, 0.0
        %v904 = vmax.f32 %v833, 0.0
        %v905 = vmax.f32 %v836, 0.0
        %v906 = vmax.f32 %v839, 0.0
        %v907 = vmax.f32 %v842, 0.0
        %v908 = vmax.f32 %v845, 0.0
        %v909 = vmax.f32 %v848, 0.0
        %v910 = vmax.f32 %v851, 0.0
        %v911 = vmax.f32 %v854, 0.0
        %v912 = vmax.f32 %v857, 0.0
        %v913 = vmax.f32 %v860, 0.0
        %v914 = vmax.f32 %v863, 0.0
        %v915 = vmax.f32 %v866, 0.0
        %v916 = vmax.f32 %v869, 0.0
        %v917 = vmax.f32 %v872, 0.0
        %v918 = vmax.f32 %v875, 0.0
        %v919 = vmax.f32 %v878, 0.0
        %v920 = vmax.f32 %v881, 0.0
        %v921 = vmax.f32 %v884, 0.0
        %v922 = vmax.f32 %v887, 0.0
        %v923 = vmax.f32 %v890, 0.0
        %925 = vset.pattern.permute.xlu0 0
        %926 = vperm.xlu0 %925, %v195
        %v927 = vpop.permute.xlu0 %926
        %v928 = vrot.slane %v927, 4
        %v930 = vsel %vm440, %v195, 0
        %v933 = vsel %vm440, %v892, 0
        %v936 = vsel %vm440, %v893, 0
        %v939 = vsel %vm440, %v894, 0
        %v942 = vsel %vm440, %v895, 0
        %v945 = vsel %vm440, %v896, 0
        %v948 = vsel %vm440, %v897, 0
        %v951 = vsel %vm440, %v898, 0
        %v954 = vsel %vm440, %v899, 0
        %v957 = vsel %vm440, %v900, 0
        %v960 = vsel %vm440, %v901, 0
        %v963 = vsel %vm440, %v902, 0
        %v966 = vsel %vm440, %v903, 0
        %v969 = vsel %vm440, %v904, 0
        %v972 = vsel %vm440, %v905, 0
        %v975 = vsel %vm440, %v906, 0
        %v978 = vsel %vm440, %v907, 0
        %v981 = vsel %vm440, %v908, 0
        %v984 = vsel %vm440, %v909, 0
        %v987 = vsel %vm440, %v910, 0
        %v990 = vsel %vm440, %v911, 0
        %v993 = vsel %vm440, %v912, 0
        %v996 = vsel %vm440, %v913, 0
        %v999 = vsel %vm440, %v914, 0
        %v1002 = vsel %vm440, %v915, 0
        %v1005 = vsel %vm440, %v916, 0
        %v1008 = vsel %vm440, %v917, 0
        %v1011 = vsel %vm440, %v918, 0
        %v1014 = vsel %vm440, %v919, 0
        %v1017 = vsel %vm440, %v920, 0
        %v1020 = vsel %vm440, %v921, 0
        %v1023 = vsel %vm440, %v922, 0
        %v1026 = vsel %vm440, %v923, 0
        %1028 = vmatpush.xpose.msra.mxu0 %v978
        %1029 = vmatpush.xpose.msra.mxu0 %v975
        %1030 = vmatpush.xpose.msra.mxu0 %v972
        %1031 = vmatpush.xpose.msra.mxu0 %v969
        %1032 = vmatpush.xpose.msra.mxu0 %v966
        %1033 = vmatpush.xpose.msra.mxu0 %v963
        %1034 = vmatpush.xpose.msra.mxu0 %v960
        %1035 = vmatpush.xpose.msra.mxu0 %v957
        %1036 = vmatpush.xpose.msra.mxu0 %v954
        %1037 = vmatpush.xpose.msra.mxu0 %v951
        %1038 = vmatpush.xpose.msra.mxu0 %v948
        %1039 = vmatpush.xpose.msra.mxu0 %v945
        %1040 = vmatpush.xpose.msra.mxu0 %v942
        %1041 = vmatpush.xpose.msra.mxu0 %v939
        %1042 = vmatpush.xpose.msra.mxu0 %v936
        %1043 = vmatpush.xpose.msra.mxu0 %v933
        %1044 = vmatmul.f32.gmra.mxu0 %v930
        %v1045 = vpop.f32.mrf.mxu0
        %v1046 = vadd.f32 %v928, %v1045
        %1047 = vdwg.mxu0
        %1048 = vmatpush.xpose.msra.mxu0 %v1026
        %1049 = vmatpush.xpose.msra.mxu0 %v1023
        %1050 = vmatpush.xpose.msra.mxu0 %v1020
        %1051 = vmatpush.xpose.msra.mxu0 %v1017
        %1052 = vmatpush.xpose.msra.mxu0 %v1014
        %1053 = vmatpush.xpose.msra.mxu0 %v1011
        %1054 = vmatpush.xpose.msra.mxu0 %v1008
        %1055 = vmatpush.xpose.msra.mxu0 %v1005
        %1056 = vmatpush.xpose.msra.mxu0 %v1002
        %1057 = vmatpush.xpose.msra.mxu0 %v999
        %1058 = vmatpush.xpose.msra.mxu0 %v996
        %1059 = vmatpush.xpose.msra.mxu0 %v993
        %1060 = vmatpush.xpose.msra.mxu0 %v990
        %1061 = vmatpush.xpose.msra.mxu0 %v987
        %1062 = vmatpush.xpose.msra.mxu0 %v984
        %1063 = vmatpush.xpose.msra.mxu0 %v981
        %1064 = vmatmul.f32.gmra.mxu0 %v930
        %v1065 = vpop.f32.mrf.mxu0
        %v1066 = vadd.f32 %v928, %v1065
        %1067 = vdwg.mxu0
        %v1070 = vrot.slane %v1066, 7
        %vm1071 = vcmask 1040384
        %v1072 = vsel %vm1071, %v1046, %v1070
        %v1074 = vlaneseq
        %vm1075 = vcmp.ge.s32.totalorder %v1074, 0
        %vm1076 = vcmp.lt.s32.totalorder %v1074, 256
        %vm1077 = vmand %vm1075, %vm1076
        %1078 = vst.msk [vmem:[%s137] sm:$0x3] %vm1077, %v1072
        %s1079 = sand.u32 %s71, 1
        %s1080 = scalar_lea.sflag [#allocation3], %s1079
        %s1081 = sand.u32 %s71, 1
        %s1082 = smul.addr %s1081, 2
        %s1083 = scalar_lea.vmem [#allocation2], %s1082
        // Predicated region
        $region29: #{tpu_custom_call.1} parent=27 // pred_check
          %p1084 = pneg %p81
        $region30: #{tpu_custom_call.1} parent=27 // pred_check_branch
          %1086 = sbr.rel (%p1084) target = $region32
        $region31: #{tpu_custom_call.1} parent=27 // pred_region
          %s1087 = smul.u32 2, %s16
          %1089 = vsyncadd %s1080, 0
          %s1090 = scalar_lea.hbm %s2, %s1087
          %s1092 = sshll.u32 %s1083, 4
          %s1093 = int_to_ptr.vmem [resolvable:$true] %s1092
          %s1094 = sshll.u32 %s1090, 4
          %s1095 = int_to_ptr.hbm [resolvable:$true] %s1094
          %1097 = dma.vmem_to_hbm [thread:$0]  %s1093, 32, %s1095, %s1080
        $region32: #{tpu_custom_call.1} parent=27 // pred_fallthru
          _
      $region28: #{tpu_custom_call.1} parent=5 // pred_fallthru
        _
      %p1098 = scmp.le.s32.totalorder 2, %s11
      // Predicated region
      $region33: #{tpu_custom_call.1} parent=5 // pred_check
        %p1099 = pneg %p1098
      $region34: #{tpu_custom_call.1} parent=5 // pred_check_branch
        %1101 = sbr.rel (%p1099) target = $region36
      $region35: #{tpu_custom_call.1} parent=5 // pred_region
        %s1102 = ssub.s32 %s11, 2
        // Predicated region
        $region37: #{tpu_custom_call.1} parent=35 // pred_check
          %p1103 = pneg %p87
        $region38: #{tpu_custom_call.1} parent=35 // pred_check_branch
          %1105 = sbr.rel (%p1103) target = $region40
        $region39: #{tpu_custom_call.1} parent=35 // pred_region
          %s1106 = sand.u32 %s72, 1
          %s1107 = scalar_lea.sflag [#allocation3], %s1106
          %s1108 = sand.u32 %s72, 1
          %s1109 = smul.addr %s1108, 2
          %s1110 = scalar_lea.vmem [#allocation2], %s1109
          %1112 = dma.done %s1107, 32
        $region40: #{tpu_custom_call.1} parent=35 // pred_fallthru
          _
      $region36: #{tpu_custom_call.1} parent=5 // pred_fallthru
        _
    $region6: #{tpu_custom_call.1} parent=1 // loop_footer
      %s15 = sadd.s32 1, %s11
    $region7: #{tpu_custom_call.1} parent=1 // loop_footer_branch
      %10 = sbr.rel target = $region3
    $region8: #{tpu_custom_call.1} parent=1 // loop_exit
      _
    %1113 = vsyncpa [#allocation3], 1
    %s1114 = scalar_lea.sflag [#allocation3], 1
    %1115 = vsyncpa %s1114, 1

</llo_original>
